<compile_context>
chip_gen: v7x
topology: tpu7x:2x2x1
jax: 0.10.0
libtpu: 0.0.40
codegen_flags: <defaults>
</compile_context>

<pallas_src>
import jax
import jax.numpy as jnp
from jax import lax
from jax.experimental import pallas as pl
from jax.experimental.pallas import tpu as pltpu


def _round_up(x: int, m: int) -> int:
    return (x + m - 1) // m * m


def critic_kernel(state_ref, action_ref, w1s_ref, w1a_ref, b1_ref,
                  w2_ref, b2_ref, w3_ref, b3_ref, o_ref):
    # state_ref:  (TB, n_states) f32     action_ref: (TB, 1) f32
    # w1s_ref:    (n_states, 128) f32    w1a_ref:    (1, 128) f32   b1_ref: (1, 128) f32
    # w2_ref:     (128, 128) bf16        b2_ref:     (1, 128) f32
    # w3_ref:     (8, 128) bf16 (row-replicated w3)   b3_ref: (1, 1) f32 in SMEM
    # o_ref:      (1, TB) f32  (lane-dense output row)

    # ---- Layer 1: K = n_states+1 contraction as VPU broadcast FMAs (no MXU pass
    #      with K padded 4 -> 128/256, and no wrapper-side concat through HBM). ----
    h1 = b1_ref[...] + action_ref[...] * w1a_ref[...]            # (TB, 128)
    for k in range(state_ref.shape[1]):                          # static, tiny unroll
        h1 = h1 + state_ref[:, k:k + 1] * w1s_ref[k:k + 1, :]
    h1 = jnp.maximum(h1, 0.0)                                    # ReLU (f32)

    # ---- Layer 2: the real 128x128 matmul -> MXU, bf16 inputs, f32 accumulation. ----
    h2 = jnp.dot(h1.astype(jnp.bfloat16), w2_ref[...],
                 preferred_element_type=jnp.float32)             # (TB, 128) f32
    h2 = jnp.maximum(h2 + b2_ref[...], 0.0)                      # bias + ReLU (f32)

    # ---- Layer 3: 128 -> 1, computed transposed (w3 @ h2^T via dimension_numbers,
    #      the standard q@k.T pattern) so the result is already lane-major. ----
    out8 = lax.dot_general(w3_ref[...], h2.astype(jnp.bfloat16),
                           dimension_numbers=(((1,), (1,)), ((), ())),
                           preferred_element_type=jnp.float32)   # (8, TB), rows identical
    o_ref[...] = out8[0:1, :] + b3_ref[0, 0]                     # lane-dense (1, TB) store


def init_critic_params(key, n_states=3, hidden=128):
    """PyTorch nn.Linear-style init (U[-1/sqrt(fan_in), 1/sqrt(fan_in)]), weights stored (in, out)."""
    dims = [(n_states + 1, hidden), (hidden, hidden), (hidden, 1)]
    params = []
    for (fan_in, fan_out) in dims:
        key, kw, kb = jax.random.split(key, 3)
        bound = 1.0 / jnp.sqrt(fan_in)
        w = jax.random.uniform(kw, (fan_in, fan_out), jnp.float32, -bound, bound)
        b = jax.random.uniform(kb, (1, fan_out), jnp.float32, -bound, bound)
        params += [w, b]
    return tuple(params)


def critic_forward(state, action, params, *, block_b=1024):
    """state: (B, n_states), action: (B, 1) -> value: (B, 1)."""
    w1, b1, w2, b2, w3, b3 = params
    n_states = w1.shape[0] - 1
    hidden = w1.shape[1]
    B = state.shape[0]

    state = state.astype(jnp.float32)
    action = action.astype(jnp.float32)

    # Tiny per-call weight prep (constant-folded under jit):
    w1s = w1[:n_states, :]                                        # (n_states, 128) f32
    w1a = w1[n_states:n_states + 1, :]                            # (1, 128) f32
    w2b = w2.astype(jnp.bfloat16)                                 # (128, 128) bf16 (MXU layer)
    w3p = jnp.broadcast_to(w3.reshape(1, hidden), (8, hidden)).astype(jnp.bfloat16)
    b3s = b3.reshape(1, 1)                                        # scalar -> SMEM

    # Batch tiling: TB rows per grid step, multiple of 128 so the (1, TB) output block
    # is lane-dense.  Per-tile streamed VMEM (double-buffered, lane-padded) is
    # ~2 * 2 * TB * 128 * 4B ≈ 2 MiB at TB=1024 — far under v7x's 64 MiB VMEM.
    TB = _round_up(min(block_b, _round_up(B, 128)), 128)
    Bp = _round_up(B, TB)
    if Bp != B:  # pad so every grid step is a full tile (padded rows sliced off below)
        state = jnp.pad(state, ((0, Bp - B), (0, 0)))
        action = jnp.pad(action, ((0, Bp - B), (0, 0)))
    grid = (Bp // TB,)

    # Note: x/action streams left at default depth-2 double buffering; bump via
    # pipeline_mode=pl.Buffered(3) only if profiling shows exposed DMA.
    out = pl.pallas_call(
        critic_kernel,
        out_shape=jax.ShapeDtypeStruct((1, Bp), jnp.float32),
        grid=grid,
        in_specs=[
            pl.BlockSpec((TB, n_states), lambda i: (i, 0)),        # state   (streamed)
            pl.BlockSpec((TB, 1), lambda i: (i, 0)),               # action  (streamed)
            pl.BlockSpec((n_states, hidden), lambda i: (0, 0)),    # w1_state  (resident)
            pl.BlockSpec((1, hidden), lambda i: (0, 0)),           # w1_action (resident)
            pl.BlockSpec((1, hidden), lambda i: (0, 0)),           # b1        (resident)
            pl.BlockSpec((hidden, hidden), lambda i: (0, 0)),      # w2 bf16   (resident)
            pl.BlockSpec((1, hidden), lambda i: (0, 0)),           # b2        (resident)
            pl.BlockSpec((8, hidden), lambda i: (0, 0)),           # w3 row(s) (resident)
            pl.BlockSpec(memory_space=pltpu.MemorySpace.SMEM),     # b3 scalar (SMEM)
        ],
        out_specs=pl.BlockSpec((1, TB), lambda i: (0, i)),         # lane-dense output row
        compiler_params=pltpu.CompilerParams(
            dimension_semantics=("parallel",)),                    # v7x: 2 TCs split batch
    )(state, action, w1s, w1a, b1, w2b, b2, w3p, b3s)

    return out.reshape(Bp, 1)[:B]


def critic_forward_ref(state, action, params):
    """Pure-JAX reference mirroring the kernel's arithmetic (bf16 MXU layers, f32 elsewhere)."""
    w1, b1, w2, b2, w3, b3 = params
    n = state.shape[1]
    state = state.astype(jnp.float32)
    action = action.astype(jnp.float32)
    h1 = b1 + action * w1[n:n + 1, :]
    for k in range(n):
        h1 = h1 + state[:, k:k + 1] * w1[k:k + 1, :]
    h1 = jnp.maximum(h1, 0.0)
    h2 = jnp.dot(h1.astype(jnp.bfloat16), w2.astype(jnp.bfloat16),
                 preferred_element_type=jnp.float32)
    h2 = jnp.maximum(h2 + b2, 0.0)
    out = jnp.dot(h2.astype(jnp.bfloat16), w3.astype(jnp.bfloat16),
                  preferred_element_type=jnp.float32)
    return out + b3


if __name__ == "__main__":
    n_states = 3
    batch = 8

    key = jax.random.PRNGKey(0)
    kp, ks, ka = jax.random.split(key, 3)

    params = init_critic_params(kp, n_states=n_states, hidden=128)
    state = jax.random.normal(ks, (batch, n_states), jnp.float32)
    action = jax.random.normal(ka, (batch, 1), jnp.float32)

    out = jax.jit(critic_forward)(state, action, params)
    out = jax.block_until_ready(out)

    ref = critic_forward_ref(state, action, params)
    assert out.shape == (batch, 1)
    # tolerance accounts for bf16 MXU layers / accumulation-order differences
    assert jnp.allclose(out, ref, atol=1e-3, rtol=1e-3), "mismatch vs reference"

    print("KERNEL_OK")
</pallas_src>

<mosaic_0001>
module attributes {stable_mosaic.version = 11 : i64} {
  func.func @critic_kernel(%arg0: i32, %arg1: memref<128x3xf32, #tpu.memory_space<vmem>>, %arg2: memref<128x1xf32, #tpu.memory_space<vmem>>, %arg3: memref<3x128xf32, #tpu.memory_space<vmem>>, %arg4: memref<1x128xf32, #tpu.memory_space<vmem>>, %arg5: memref<1x128xf32, #tpu.memory_space<vmem>>, %arg6: memref<128x128xbf16, #tpu.memory_space<vmem>>, %arg7: memref<1x128xf32, #tpu.memory_space<vmem>>, %arg8: memref<8x128xbf16, #tpu.memory_space<vmem>>, %arg9: memref<1x1xf32, #tpu.memory_space<smem>>, %arg10: memref<1x128xf32, #tpu.memory_space<vmem>>) attributes {dimension_semantics = [#tpu.dimension_semantics<parallel>], iteration_bounds = array<i64: 1>, scalar_prefetch = 0 : i64, scratch_operands = 0 : i64, tpu.core_type = #tpu.core_type<tc>, window_params = [{transform_indices = @transform_0, window_bounds = array<i64: 128, 3>}, {transform_indices = @transform_1, window_bounds = array<i64: 128, 1>}, {pipeline_mode = #tpu.pipeline_mode<synchronous>, transform_indices = @transform_2, window_bounds = array<i64: 3, 128>}, {pipeline_mode = #tpu.pipeline_mode<synchronous>, transform_indices = @transform_3, window_bounds = array<i64: 1, 128>}, {pipeline_mode = #tpu.pipeline_mode<synchronous>, transform_indices = @transform_4, window_bounds = array<i64: 1, 128>}, {pipeline_mode = #tpu.pipeline_mode<synchronous>, transform_indices = @transform_5, window_bounds = array<i64: 128, 128>}, {pipeline_mode = #tpu.pipeline_mode<synchronous>, transform_indices = @transform_6, window_bounds = array<i64: 1, 128>}, {pipeline_mode = #tpu.pipeline_mode<synchronous>, transform_indices = @transform_7, window_bounds = array<i64: 8, 128>}, {transform_indices = @transform_8, window_bounds = array<i64: 1, 1>}, {transform_indices = @transform_9, window_bounds = array<i64: 1, 128>}]} {
    %c0 = arith.constant 0 : index
    %c0_0 = arith.constant 0 : index
    %0 = vector.load %arg5[%c0, %c0_0] : memref<1x128xf32, #tpu.memory_space<vmem>>, vector<1x128xf32>
    %c0_1 = arith.constant 0 : index
    %c0_2 = arith.constant 0 : index
    %1 = vector.load %arg2[%c0_1, %c0_2] : memref<128x1xf32, #tpu.memory_space<vmem>>, vector<128x1xf32>
    %c0_3 = arith.constant 0 : index
    %c0_4 = arith.constant 0 : index
    %2 = vector.load %arg4[%c0_3, %c0_4] : memref<1x128xf32, #tpu.memory_space<vmem>>, vector<1x128xf32>
    %3 = vector.broadcast %1 : vector<128x1xf32> to vector<128x128xf32>
    %4 = vector.broadcast %2 : vector<1x128xf32> to vector<128x128xf32>
    %5 = arith.mulf %3, %4 : vector<128x128xf32>
    %6 = vector.broadcast %0 : vector<1x128xf32> to vector<128x128xf32>
    %7 = arith.addf %6, %5 : vector<128x128xf32>
    %c0_5 = arith.constant 0 : index
    %c0_6 = arith.constant 0 : index
    %8 = vector.load %arg1[%c0_5, %c0_6] : memref<128x3xf32, #tpu.memory_space<vmem>>, vector<128x1xf32>
    %c0_7 = arith.constant 0 : index
    %c0_8 = arith.constant 0 : index
    %9 = vector.load %arg3[%c0_7, %c0_8] : memref<3x128xf32, #tpu.memory_space<vmem>>, vector<1x128xf32>
    %10 = vector.broadcast %8 : vector<128x1xf32> to vector<128x128xf32>
    %11 = vector.broadcast %9 : vector<1x128xf32> to vector<128x128xf32>
    %12 = arith.mulf %10, %11 : vector<128x128xf32>
    %13 = arith.addf %7, %12 : vector<128x128xf32>
    %c0_9 = arith.constant 0 : index
    %c1 = arith.constant 1 : index
    %14 = vector.load %arg1[%c0_9, %c1] : memref<128x3xf32, #tpu.memory_space<vmem>>, vector<128x1xf32>
    %c1_10 = arith.constant 1 : index
    %c0_11 = arith.constant 0 : index
    %15 = vector.load %arg3[%c1_10, %c0_11] : memref<3x128xf32, #tpu.memory_space<vmem>>, vector<1x128xf32>
    %16 = vector.broadcast %14 : vector<128x1xf32> to vector<128x128xf32>
    %17 = vector.broadcast %15 : vector<1x128xf32> to vector<128x128xf32>
    %18 = arith.mulf %16, %17 : vector<128x128xf32>
    %19 = arith.addf %13, %18 : vector<128x128xf32>
    %c0_12 = arith.constant 0 : index
    %c2 = arith.constant 2 : index
    %20 = vector.load %arg1[%c0_12, %c2] : memref<128x3xf32, #tpu.memory_space<vmem>>, vector<128x1xf32>
    %c2_13 = arith.constant 2 : index
    %c0_14 = arith.constant 0 : index
    %21 = vector.load %arg3[%c2_13, %c0_14] : memref<3x128xf32, #tpu.memory_space<vmem>>, vector<1x128xf32>
    %22 = vector.broadcast %20 : vector<128x1xf32> to vector<128x128xf32>
    %23 = vector.broadcast %21 : vector<1x128xf32> to vector<128x128xf32>
    %24 = arith.mulf %22, %23 : vector<128x128xf32>
    %25 = arith.addf %19, %24 : vector<128x128xf32>
    %cst = arith.constant 0.000000e+00 : f32
    %26 = vector.broadcast %cst : f32 to vector<128x128xf32>
    %27 = arith.maximumf %25, %26 : vector<128x128xf32>
    %28 = arith.truncf %27 : vector<128x128xf32> to vector<128x128xbf16>
    %c0_15 = arith.constant 0 : index
    %c0_16 = arith.constant 0 : index
    %29 = vector.load %arg6[%c0_15, %c0_16] : memref<128x128xbf16, #tpu.memory_space<vmem>>, vector<128x128xbf16>
    %cst_17 = arith.constant dense<0.000000e+00> : vector<128x128xf32>
    %30 = tpu.matmul %28, %29, %cst_17 {dimension_numbers = #tpu.dot_dimension_numbers<[1], [0], [0], [1], [0, 0, 1, 1], [], []>} : vector<128x128xbf16>, vector<128x128xbf16>, vector<128x128xf32> -> vector<128x128xf32>
    %c0_18 = arith.constant 0 : index
    %c0_19 = arith.constant 0 : index
    %31 = vector.load %arg7[%c0_18, %c0_19] : memref<1x128xf32, #tpu.memory_space<vmem>>, vector<1x128xf32>
    %32 = vector.broadcast %31 : vector<1x128xf32> to vector<128x128xf32>
    %33 = arith.addf %30, %32 : vector<128x128xf32>
    %cst_20 = arith.constant 0.000000e+00 : f32
    %34 = vector.broadcast %cst_20 : f32 to vector<128x128xf32>
    %35 = arith.maximumf %33, %34 : vector<128x128xf32>
    %c0_21 = arith.constant 0 : index
    %c0_22 = arith.constant 0 : index
    %36 = vector.load %arg8[%c0_21, %c0_22] : memref<8x128xbf16, #tpu.memory_space<vmem>>, vector<8x128xbf16>
    %37 = arith.truncf %35 : vector<128x128xf32> to vector<128x128xbf16>
    %cst_23 = arith.constant dense<0.000000e+00> : vector<8x128xf32>
    %38 = tpu.matmul %36, %37, %cst_23 {dimension_numbers = #tpu.dot_dimension_numbers<[1], [1], [0], [0], [0, 0, 1, 0], [], []>} : vector<8x128xbf16>, vector<128x128xbf16>, vector<8x128xf32> -> vector<8x128xf32>
    %39 = vector.extract_strided_slice %38 {offsets = [0, 0], sizes = [1, 128], strides = [1, 1]} : vector<8x128xf32> to vector<1x128xf32>
    %c0_24 = arith.constant 0 : index
    %c0_25 = arith.constant 0 : index
    %40 = memref.load %arg9[%c0_24, %c0_25] : memref<1x1xf32, #tpu.memory_space<smem>>
    %41 = vector.broadcast %40 : f32 to vector<1x128xf32>
    %42 = arith.addf %39, %41 : vector<1x128xf32>
    %c0_26 = arith.constant 0 : index
    %c0_27 = arith.constant 0 : index
    %43 = vector.load %arg10[%c0_26, %c0_27] : memref<1x128xf32, #tpu.memory_space<vmem>>, vector<1x128xf32>
    tpu.vector_store %arg10[%c0_26, %c0_27], %42 {strides = array<i32>} : memref<1x128xf32, #tpu.memory_space<vmem>>, vector<1x128xf32>,
    return
  }
  func.func @transform_0(%arg0: i32) -> (i32, i32) {
    %c0_i32 = arith.constant 0 : i32
    %c0_i32_0 = arith.constant 0 : i32
    return %arg0, %c0_i32 : i32, i32
  }
  func.func @transform_1(%arg0: i32) -> (i32, i32) {
    %c0_i32 = arith.constant 0 : i32
    %c0_i32_0 = arith.constant 0 : i32
    return %arg0, %c0_i32 : i32, i32
  }
  func.func @transform_2(%arg0: i32) -> (i32, i32) {
    %c0_i32 = arith.constant 0 : i32
    %c0_i32_0 = arith.constant 0 : i32
    %c0_i32_1 = arith.constant 0 : i32
    return %c0_i32, %c0_i32_0 : i32, i32
  }
  func.func @transform_3(%arg0: i32) -> (i32, i32) {
    %c0_i32 = arith.constant 0 : i32
    %c0_i32_0 = arith.constant 0 : i32
    %c0_i32_1 = arith.constant 0 : i32
    return %c0_i32, %c0_i32_0 : i32, i32
  }
  func.func @transform_4(%arg0: i32) -> (i32, i32) {
    %c0_i32 = arith.constant 0 : i32
    %c0_i32_0 = arith.constant 0 : i32
    %c0_i32_1 = arith.constant 0 : i32
    return %c0_i32, %c0_i32_0 : i32, i32
  }
  func.func @transform_5(%arg0: i32) -> (i32, i32) {
    %c0_i32 = arith.constant 0 : i32
    %c0_i32_0 = arith.constant 0 : i32
    %c0_i32_1 = arith.constant 0 : i32
    return %c0_i32, %c0_i32_0 : i32, i32
  }
  func.func @transform_6(%arg0: i32) -> (i32, i32) {
    %c0_i32 = arith.constant 0 : i32
    %c0_i32_0 = arith.constant 0 : i32
    %c0_i32_1 = arith.constant 0 : i32
    return %c0_i32, %c0_i32_0 : i32, i32
  }
  func.func @transform_7(%arg0: i32) -> (i32, i32) {
    %c0_i32 = arith.constant 0 : i32
    %c0_i32_0 = arith.constant 0 : i32
    %c0_i32_1 = arith.constant 0 : i32
    return %c0_i32, %c0_i32_0 : i32, i32
  }
  func.func @transform_8(%arg0: i32) -> (i32, i32) {
    %c0_i32 = arith.constant 0 : i32
    %c0_i32_0 = arith.constant 0 : i32
    %c0_i32_1 = arith.constant 0 : i32
    return %c0_i32, %c0_i32_0 : i32, i32
  }
  func.func @transform_9(%arg0: i32) -> (i32, i32) {
    %c0_i32 = arith.constant 0 : i32
    %c0_i32_0 = arith.constant 0 : i32
    return %c0_i32, %arg0 : i32, i32
  }
}

</mosaic_0001>

<llo_original>
// kernel: critic_forward.1
$region0: #{critic_forward.1}
  #allocation0 [shape = 'u32[]', space=smem, size = 0x4, offset = 0x4, fixed_abs, tag = 'smem constant byte address 0x4 - core index']
  #allocation1 [shape = 'u32[144,128]{1,0:T(1,128)}', space=vmem, size = 0x12000, scoped, tag = 'internal scratch']
  #allocation2 [shape = 'f32[1,1]{1,0:T(1,128)S(6)}', space=smem, size = 0x200, scoped, tag = 'scoped memory for critic_forward.1']
  %s0 = inlined_call_operand.vmem [shape: f32[128,3], index: 0, kind: input, shape index: {}]
  %s1 = inlined_call_operand.vmem [shape: f32[128,1], index: 1, kind: input, shape index: {}]
  %s2 = inlined_call_operand.vmem [shape: f32[3,128], index: 2, kind: input, shape index: {}]
  %s3 = inlined_call_operand.vmem [shape: f32[1,128], index: 3, kind: input, shape index: {}]
  %s4 = inlined_call_operand.vmem [shape: f32[1,128], index: 4, kind: input, shape index: {}]
  %s5 = inlined_call_operand.vmem [shape: bf16[128,128], index: 5, kind: input, shape index: {}]
  %s6 = inlined_call_operand.vmem [shape: f32[1,128], index: 6, kind: input, shape index: {}]
  %s7 = inlined_call_operand.vmem [shape: bf16[8,128], index: 7, kind: input, shape index: {}]
  %s8 = inlined_call_operand.<no memory space> [shape: f32[1,1], index: 8, kind: input, shape index: {}]
  %s9 = inlined_call_operand.vmem [shape: f32[1,128], index: 9, kind: output, shape index: {}]
  %s10 = sld [smem:[#allocation0]]
  $region46: #{critic_forward.1} parent=0
    _
  %s12 = ssub.s32 1, %s10
  %s13 = scalar_select 0, %s12, %s10
  %14 = sst [smem:[#allocation2]] %s8
  // Predicated region
  $region2: #{critic_forward.1} parent=0 // pred_check
    _
  $region3: #{critic_forward.1} parent=0 // pred_check_branch
    %16 = sbr.rel (0) target = $region5
  $region4: #{critic_forward.1} parent=0 // pred_region
    _
  $region5: #{critic_forward.1} parent=0 // pred_fallthru
    _
  // Predicated region
  $region6: #{critic_forward.1} parent=0 // pred_check
    _
  $region7: #{critic_forward.1} parent=0 // pred_check_branch
    %18 = sbr.rel (0) target = $region9
  $region8: #{critic_forward.1} parent=0 // pred_region
    _
  $region9: #{critic_forward.1} parent=0 // pred_fallthru
    _
  // Predicated region
  $region10: #{critic_forward.1} parent=0 // pred_check
    _
  $region11: #{critic_forward.1} parent=0 // pred_check_branch
    %20 = sbr.rel (0) target = $region13
  $region12: #{critic_forward.1} parent=0 // pred_region
    _
  $region13: #{critic_forward.1} parent=0 // pred_fallthru
    _
  // Predicated region
  $region14: #{critic_forward.1} parent=0 // pred_check
    _
  $region15: #{critic_forward.1} parent=0 // pred_check_branch
    %22 = sbr.rel (0) target = $region17
  $region16: #{critic_forward.1} parent=0 // pred_region
    _
  $region17: #{critic_forward.1} parent=0 // pred_fallthru
    _
  // Predicated region
  $region18: #{critic_forward.1} parent=0 // pred_check
    _
  $region19: #{critic_forward.1} parent=0 // pred_check_branch
    %24 = sbr.rel (0) target = $region21
  $region20: #{critic_forward.1} parent=0 // pred_region
    _
  $region21: #{critic_forward.1} parent=0 // pred_fallthru
    _
  // Predicated region
  $region22: #{critic_forward.1} parent=0 // pred_check
    _
  $region23: #{critic_forward.1} parent=0 // pred_check_branch
    %26 = sbr.rel (0) target = $region25
  $region24: #{critic_forward.1} parent=0 // pred_region
    _
  $region25: #{critic_forward.1} parent=0 // pred_fallthru
    _
  // Predicated region
  $region26: #{critic_forward.1} parent=0 // pred_check
    _
  $region27: #{critic_forward.1} parent=0 // pred_check_branch
    %28 = sbr.rel (0) target = $region29
  $region28: #{critic_forward.1} parent=0 // pred_region
    _
  $region29: #{critic_forward.1} parent=0 // pred_fallthru
    _
  // Predicated region
  $region30: #{critic_forward.1} parent=0 // pred_check
    _
  $region31: #{critic_forward.1} parent=0 // pred_check_branch
    %30 = sbr.rel (0) target = $region33
  $region32: #{critic_forward.1} parent=0 // pred_region
    _
  $region33: #{critic_forward.1} parent=0 // pred_fallthru
    _
  // Predicated region
  $region34: #{critic_forward.1} parent=0 // pred_check
    _
  $region35: #{critic_forward.1} parent=0 // pred_check_branch
    %32 = sbr.rel (0) target = $region37
  $region36: #{critic_forward.1} parent=0 // pred_region
    _
  $region37: #{critic_forward.1} parent=0 // pred_fallthru
    _
  %v34 = vld [vmem:[%s4] sm:$0x1]
  %v35 = vld [vmem:[%s1] sm:$0xff]
  %v36 = vld [vmem:[%s1 + $0x8] sm:$0xff]
  %v37 = vld [vmem:[%s1 + $0x10] sm:$0xff]
  %v38 = vld [vmem:[%s1 + $0x18] sm:$0xff]
  %v39 = vld [vmem:[%s1 + $0x20] sm:$0xff]
  %v40 = vld [vmem:[%s1 + $0x28] sm:$0xff]
  %v41 = vld [vmem:[%s1 + $0x30] sm:$0xff]
  %v42 = vld [vmem:[%s1 + $0x38] sm:$0xff]
  %v43 = vld [vmem:[%s1 + $0x40] sm:$0xff]
  %v44 = vld [vmem:[%s1 + $0x48] sm:$0xff]
  %v45 = vld [vmem:[%s1 + $0x50] sm:$0xff]
  %v46 = vld [vmem:[%s1 + $0x58] sm:$0xff]
  %v47 = vld [vmem:[%s1 + $0x60] sm:$0xff]
  %v48 = vld [vmem:[%s1 + $0x68] sm:$0xff]
  %v49 = vld [vmem:[%s1 + $0x70] sm:$0xff]
  %v50 = vld [vmem:[%s1 + $0x78] sm:$0xff]
  %v51 = vld [vmem:[%s3] sm:$0x1]
  %53 = vset.pattern.permute.xlu0 0
  %54 = vperm.xlu0 %53, %v35
  %v55 = vpop.permute.xlu0 %54
  %58 = vset.pattern.permute.xlu0 0
  %59 = vperm.xlu0 %58, %v36
  %v60 = vpop.permute.xlu0 %59
  %63 = vset.pattern.permute.xlu0 0
  %64 = vperm.xlu0 %63, %v37
  %v65 = vpop.permute.xlu0 %64
  %68 = vset.pattern.permute.xlu0 0
  %69 = vperm.xlu0 %68, %v38
  %v70 = vpop.permute.xlu0 %69
  %73 = vset.pattern.permute.xlu0 0
  %74 = vperm.xlu0 %73, %v39
  %v75 = vpop.permute.xlu0 %74
  %78 = vset.pattern.permute.xlu0 0
  %79 = vperm.xlu0 %78, %v40
  %v80 = vpop.permute.xlu0 %79
  %83 = vset.pattern.permute.xlu0 0
  %84 = vperm.xlu0 %83, %v41
  %v85 = vpop.permute.xlu0 %84
  %88 = vset.pattern.permute.xlu0 0
  %89 = vperm.xlu0 %88, %v42
  %v90 = vpop.permute.xlu0 %89
  %93 = vset.pattern.permute.xlu0 0
  %94 = vperm.xlu0 %93, %v43
  %v95 = vpop.permute.xlu0 %94
  %98 = vset.pattern.permute.xlu0 0
  %99 = vperm.xlu0 %98, %v44
  %v100 = vpop.permute.xlu0 %99
  %103 = vset.pattern.permute.xlu0 0
  %104 = vperm.xlu0 %103, %v45
  %v105 = vpop.permute.xlu0 %104
  %108 = vset.pattern.permute.xlu0 0
  %109 = vperm.xlu0 %108, %v46
  %v110 = vpop.permute.xlu0 %109
  %113 = vset.pattern.permute.xlu0 0
  %114 = vperm.xlu0 %113, %v47
  %v115 = vpop.permute.xlu0 %114
  %118 = vset.pattern.permute.xlu0 0
  %119 = vperm.xlu0 %118, %v48
  %v120 = vpop.permute.xlu0 %119
  %123 = vset.pattern.permute.xlu0 0
  %124 = vperm.xlu0 %123, %v49
  %v125 = vpop.permute.xlu0 %124
  %128 = vset.pattern.permute.xlu0 0
  %129 = vperm.xlu0 %128, %v50
  %v130 = vpop.permute.xlu0 %129
  %v133 = vlaneseq
  %v134 = vshrl.u32 %v133, 7
  %v135 = vsub.s32 0, %v134
  %v136 = vrot.slane %v51, %v135
  %v138 = vmul.f32 %v55, %v136
  %v139 = vmul.f32 %v60, %v136
  %v140 = vmul.f32 %v65, %v136
  %v141 = vmul.f32 %v70, %v136
  %v142 = vmul.f32 %v75, %v136
  %v143 = vmul.f32 %v80, %v136
  %v144 = vmul.f32 %v85, %v136
  %v145 = vmul.f32 %v90, %v136
  %v146 = vmul.f32 %v95, %v136
  %v147 = vmul.f32 %v100, %v136
  %v148 = vmul.f32 %v105, %v136
  %v149 = vmul.f32 %v110, %v136
  %v150 = vmul.f32 %v115, %v136
  %v151 = vmul.f32 %v120, %v136
  %v152 = vmul.f32 %v125, %v136
  %v153 = vmul.f32 %v130, %v136
  %v155 = vlaneseq
  %v156 = vshrl.u32 %v155, 7
  %v157 = vsub.s32 0, %v156
  %v158 = vrot.slane %v34, %v157
  %v160 = vadd.f32 %v158, %v138
  %v161 = vadd.f32 %v158, %v139
  %v162 = vadd.f32 %v158, %v140
  %v163 = vadd.f32 %v158, %v141
  %v164 = vadd.f32 %v158, %v142
  %v165 = vadd.f32 %v158, %v143
  %v166 = vadd.f32 %v158, %v144
  %v167 = vadd.f32 %v158, %v145
  %v168 = vadd.f32 %v158, %v146
  %v169 = vadd.f32 %v158, %v147
  %v170 = vadd.f32 %v158, %v148
  %v171 = vadd.f32 %v158, %v149
  %v172 = vadd.f32 %v158, %v150
  %v173 = vadd.f32 %v158, %v151
  %v174 = vadd.f32 %v158, %v152
  %v175 = vadd.f32 %v158, %v153
  %v176 = vld [vmem:[%s0] sm:$0xff]
  %v177 = vld [vmem:[%s0 + $0x8] sm:$0xff]
  %v178 = vld [vmem:[%s0 + $0x10] sm:$0xff]
  %v179 = vld [vmem:[%s0 + $0x18] sm:$0xff]
  %v180 = vld [vmem:[%s0 + $0x20] sm:$0xff]
  %v181 = vld [vmem:[%s0 + $0x28] sm:$0xff]
  %v182 = vld [vmem:[%s0 + $0x30] sm:$0xff]
  %v183 = vld [vmem:[%s0 + $0x38] sm:$0xff]
  %v184 = vld [vmem:[%s0 + $0x40] sm:$0xff]
  %v185 = vld [vmem:[%s0 + $0x48] sm:$0xff]
  %v186 = vld [vmem:[%s0 + $0x50] sm:$0xff]
  %v187 = vld [vmem:[%s0 + $0x58] sm:$0xff]
  %v188 = vld [vmem:[%s0 + $0x60] sm:$0xff]
  %v189 = vld [vmem:[%s0 + $0x68] sm:$0xff]
  %v190 = vld [vmem:[%s0 + $0x70] sm:$0xff]
  %v191 = vld [vmem:[%s0 + $0x78] sm:$0xff]
  %v192 = vld [vmem:[%s2] sm:$0x1]
  %194 = vset.pattern.permute.xlu0 0
  %195 = vperm.xlu0 %194, %v176
  %v196 = vpop.permute.xlu0 %195
  %199 = vset.pattern.permute.xlu0 0
  %200 = vperm.xlu0 %199, %v177
  %v201 = vpop.permute.xlu0 %200
  %204 = vset.pattern.permute.xlu0 0
  %205 = vperm.xlu0 %204, %v178
  %v206 = vpop.permute.xlu0 %205
  %209 = vset.pattern.permute.xlu0 0
  %210 = vperm.xlu0 %209, %v179
  %v211 = vpop.permute.xlu0 %210
  %214 = vset.pattern.permute.xlu0 0
  %215 = vperm.xlu0 %214, %v180
  %v216 = vpop.permute.xlu0 %215
  %219 = vset.pattern.permute.xlu0 0
  %220 = vperm.xlu0 %219, %v181
  %v221 = vpop.permute.xlu0 %220
  %224 = vset.pattern.permute.xlu0 0
  %225 = vperm.xlu0 %224, %v182
  %v226 = vpop.permute.xlu0 %225
  %229 = vset.pattern.permute.xlu0 0
  %230 = vperm.xlu0 %229, %v183
  %v231 = vpop.permute.xlu0 %230
  %234 = vset.pattern.permute.xlu0 0
  %235 = vperm.xlu0 %234, %v184
  %v236 = vpop.permute.xlu0 %235
  %239 = vset.pattern.permute.xlu0 0
  %240 = vperm.xlu0 %239, %v185
  %v241 = vpop.permute.xlu0 %240
  %244 = vset.pattern.permute.xlu0 0
  %245 = vperm.xlu0 %244, %v186
  %v246 = vpop.permute.xlu0 %245
  %249 = vset.pattern.permute.xlu0 0
  %250 = vperm.xlu0 %249, %v187
  %v251 = vpop.permute.xlu0 %250
  %254 = vset.pattern.permute.xlu0 0
  %255 = vperm.xlu0 %254, %v188
  %v256 = vpop.permute.xlu0 %255
  %259 = vset.pattern.permute.xlu0 0
  %260 = vperm.xlu0 %259, %v189
  %v261 = vpop.permute.xlu0 %260
  %264 = vset.pattern.permute.xlu0 0
  %265 = vperm.xlu0 %264, %v190
  %v266 = vpop.permute.xlu0 %265
  %269 = vset.pattern.permute.xlu0 0
  %270 = vperm.xlu0 %269, %v191
  %v271 = vpop.permute.xlu0 %270
  %v273 = vlaneseq
  %v274 = vshrl.u32 %v273, 7
  %v275 = vsub.s32 0, %v274
  %v276 = vrot.slane %v192, %v275
  %v277 = vmul.f32 %v196, %v276
  %v278 = vmul.f32 %v201, %v276
  %v279 = vmul.f32 %v206, %v276
  %v280 = vmul.f32 %v211, %v276
  %v281 = vmul.f32 %v216, %v276
  %v282 = vmul.f32 %v221, %v276
  %v283 = vmul.f32 %v226, %v276
  %v284 = vmul.f32 %v231, %v276
  %v285 = vmul.f32 %v236, %v276
  %v286 = vmul.f32 %v241, %v276
  %v287 = vmul.f32 %v246, %v276
  %v288 = vmul.f32 %v251, %v276
  %v289 = vmul.f32 %v256, %v276
  %v290 = vmul.f32 %v261, %v276
  %v291 = vmul.f32 %v266, %v276
  %v292 = vmul.f32 %v271, %v276
  %v293 = vadd.f32 %v160, %v277
  %v294 = vadd.f32 %v161, %v278
  %v295 = vadd.f32 %v162, %v279
  %v296 = vadd.f32 %v163, %v280
  %v297 = vadd.f32 %v164, %v281
  %v298 = vadd.f32 %v165, %v282
  %v299 = vadd.f32 %v166, %v283
  %v300 = vadd.f32 %v167, %v284
  %v301 = vadd.f32 %v168, %v285
  %v302 = vadd.f32 %v169, %v286
  %v303 = vadd.f32 %v170, %v287
  %v304 = vadd.f32 %v171, %v288
  %v305 = vadd.f32 %v172, %v289
  %v306 = vadd.f32 %v173, %v290
  %v307 = vadd.f32 %v174, %v291
  %v308 = vadd.f32 %v175, %v292
  %v309 = vld [vmem:[%s2 + $0x1] sm:$0x1]
  %310 = vset.pattern.permute.xlu0 1
  %311 = vperm.xlu0 %310, %v176
  %v312 = vpop.permute.xlu0 %311
  %314 = vset.pattern.permute.xlu0 1
  %315 = vperm.xlu0 %314, %v177
  %v316 = vpop.permute.xlu0 %315
  %318 = vset.pattern.permute.xlu0 1
  %319 = vperm.xlu0 %318, %v178
  %v320 = vpop.permute.xlu0 %319
  %322 = vset.pattern.permute.xlu0 1
  %323 = vperm.xlu0 %322, %v179
  %v324 = vpop.permute.xlu0 %323
  %326 = vset.pattern.permute.xlu0 1
  %327 = vperm.xlu0 %326, %v180
  %v328 = vpop.permute.xlu0 %327
  %330 = vset.pattern.permute.xlu0 1
  %331 = vperm.xlu0 %330, %v181
  %v332 = vpop.permute.xlu0 %331
  %334 = vset.pattern.permute.xlu0 1
  %335 = vperm.xlu0 %334, %v182
  %v336 = vpop.permute.xlu0 %335
  %338 = vset.pattern.permute.xlu0 1
  %339 = vperm.xlu0 %338, %v183
  %v340 = vpop.permute.xlu0 %339
  %342 = vset.pattern.permute.xlu0 1
  %343 = vperm.xlu0 %342, %v184
  %v344 = vpop.permute.xlu0 %343
  %346 = vset.pattern.permute.xlu0 1
  %347 = vperm.xlu0 %346, %v185
  %v348 = vpop.permute.xlu0 %347
  %350 = vset.pattern.permute.xlu0 1
  %351 = vperm.xlu0 %350, %v186
  %v352 = vpop.permute.xlu0 %351
  %354 = vset.pattern.permute.xlu0 1
  %355 = vperm.xlu0 %354, %v187
  %v356 = vpop.permute.xlu0 %355
  %358 = vset.pattern.permute.xlu0 1
  %359 = vperm.xlu0 %358, %v188
  %v360 = vpop.permute.xlu0 %359
  %362 = vset.pattern.permute.xlu0 1
  %363 = vperm.xlu0 %362, %v189
  %v364 = vpop.permute.xlu0 %363
  %366 = vset.pattern.permute.xlu0 1
  %367 = vperm.xlu0 %366, %v190
  %v368 = vpop.permute.xlu0 %367
  %370 = vset.pattern.permute.xlu0 1
  %371 = vperm.xlu0 %370, %v191
  %v372 = vpop.permute.xlu0 %371
  %v374 = vlaneseq
  %v375 = vshrl.u32 %v374, 7
  %v376 = vsub.s32 0, %v375
  %v377 = vrot.slane %v309, %v376
  %v378 = vmul.f32 %v312, %v377
  %v379 = vmul.f32 %v316, %v377
  %v380 = vmul.f32 %v320, %v377
  %v381 = vmul.f32 %v324, %v377
  %v382 = vmul.f32 %v328, %v377
  %v383 = vmul.f32 %v332, %v377
  %v384 = vmul.f32 %v336, %v377
  %v385 = vmul.f32 %v340, %v377
  %v386 = vmul.f32 %v344, %v377
  %v387 = vmul.f32 %v348, %v377
  %v388 = vmul.f32 %v352, %v377
  %v389 = vmul.f32 %v356, %v377
  %v390 = vmul.f32 %v360, %v377
  %v391 = vmul.f32 %v364, %v377
  %v392 = vmul.f32 %v368, %v377
  %v393 = vmul.f32 %v372, %v377
  %v394 = vadd.f32 %v293, %v378
  %v395 = vadd.f32 %v294, %v379
  %v396 = vadd.f32 %v295, %v380
  %v397 = vadd.f32 %v296, %v381
  %v398 = vadd.f32 %v297, %v382
  %v399 = vadd.f32 %v298, %v383
  %v400 = vadd.f32 %v299, %v384
  %v401 = vadd.f32 %v300, %v385
  %v402 = vadd.f32 %v301, %v386
  %v403 = vadd.f32 %v302, %v387
  %v404 = vadd.f32 %v303, %v388
  %v405 = vadd.f32 %v304, %v389
  %v406 = vadd.f32 %v305, %v390
  %v407 = vadd.f32 %v306, %v391
  %v408 = vadd.f32 %v307, %v392
  %v409 = vadd.f32 %v308, %v393
  %v410 = vld [vmem:[%s2 + $0x2] sm:$0x1]
  %411 = vset.pattern.permute.xlu0 2
  %412 = vperm.xlu0 %411, %v176
  %v413 = vpop.permute.xlu0 %412
  %415 = vset.pattern.permute.xlu0 2
  %416 = vperm.xlu0 %415, %v177
  %v417 = vpop.permute.xlu0 %416
  %419 = vset.pattern.permute.xlu0 2
  %420 = vperm.xlu0 %419, %v178
  %v421 = vpop.permute.xlu0 %420
  %423 = vset.pattern.permute.xlu0 2
  %424 = vperm.xlu0 %423, %v179
  %v425 = vpop.permute.xlu0 %424
  %427 = vset.pattern.permute.xlu0 2
  %428 = vperm.xlu0 %427, %v180
  %v429 = vpop.permute.xlu0 %428
  %431 = vset.pattern.permute.xlu0 2
  %432 = vperm.xlu0 %431, %v181
  %v433 = vpop.permute.xlu0 %432
  %435 = vset.pattern.permute.xlu0 2
  %436 = vperm.xlu0 %435, %v182
  %v437 = vpop.permute.xlu0 %436
  %439 = vset.pattern.permute.xlu0 2
  %440 = vperm.xlu0 %439, %v183
  %v441 = vpop.permute.xlu0 %440
  %443 = vset.pattern.permute.xlu0 2
  %444 = vperm.xlu0 %443, %v184
  %v445 = vpop.permute.xlu0 %444
  %447 = vset.pattern.permute.xlu0 2
  %448 = vperm.xlu0 %447, %v185
  %v449 = vpop.permute.xlu0 %448
  %451 = vset.pattern.permute.xlu0 2
  %452 = vperm.xlu0 %451, %v186
  %v453 = vpop.permute.xlu0 %452
  %455 = vset.pattern.permute.xlu0 2
  %456 = vperm.xlu0 %455, %v187
  %v457 = vpop.permute.xlu0 %456
  %459 = vset.pattern.permute.xlu0 2
  %460 = vperm.xlu0 %459, %v188
  %v461 = vpop.permute.xlu0 %460
  %463 = vset.pattern.permute.xlu0 2
  %464 = vperm.xlu0 %463, %v189
  %v465 = vpop.permute.xlu0 %464
  %467 = vset.pattern.permute.xlu0 2
  %468 = vperm.xlu0 %467, %v190
  %v469 = vpop.permute.xlu0 %468
  %471 = vset.pattern.permute.xlu0 2
  %472 = vperm.xlu0 %471, %v191
  %v473 = vpop.permute.xlu0 %472
  %v475 = vlaneseq
  %v476 = vshrl.u32 %v475, 7
  %v477 = vsub.s32 0, %v476
  %v478 = vrot.slane %v410, %v477
  %v479 = vmul.f32 %v413, %v478
  %v480 = vmul.f32 %v417, %v478
  %v481 = vmul.f32 %v421, %v478
  %v482 = vmul.f32 %v425, %v478
  %v483 = vmul.f32 %v429, %v478
  %v484 = vmul.f32 %v433, %v478
  %v485 = vmul.f32 %v437, %v478
  %v486 = vmul.f32 %v441, %v478
  %v487 = vmul.f32 %v445, %v478
  %v488 = vmul.f32 %v449, %v478
  %v489 = vmul.f32 %v453, %v478
  %v490 = vmul.f32 %v457, %v478
  %v491 = vmul.f32 %v461, %v478
  %v492 = vmul.f32 %v465, %v478
  %v493 = vmul.f32 %v469, %v478
  %v494 = vmul.f32 %v473, %v478
  %v495 = vadd.f32 %v394, %v479
  %v496 = vadd.f32 %v395, %v480
  %v497 = vadd.f32 %v396, %v481
  %v498 = vadd.f32 %v397, %v482
  %v499 = vadd.f32 %v398, %v483
  %v500 = vadd.f32 %v399, %v484
  %v501 = vadd.f32 %v400, %v485
  %v502 = vadd.f32 %v401, %v486
  %v503 = vadd.f32 %v402, %v487
  %v504 = vadd.f32 %v403, %v488
  %v505 = vadd.f32 %v404, %v489
  %v506 = vadd.f32 %v405, %v490
  %v507 = vadd.f32 %v406, %v491
  %v508 = vadd.f32 %v407, %v492
  %v509 = vadd.f32 %v408, %v493
  %v510 = vadd.f32 %v409, %v494
  %v511 = vmax.f32 %v495, 0.0
  %v512 = vmax.f32 %v496, 0.0
  %v513 = vmax.f32 %v497, 0.0
  %v514 = vmax.f32 %v498, 0.0
  %v515 = vmax.f32 %v499, 0.0
  %v516 = vmax.f32 %v500, 0.0
  %v517 = vmax.f32 %v501, 0.0
  %v518 = vmax.f32 %v502, 0.0
  %v519 = vmax.f32 %v503, 0.0
  %v520 = vmax.f32 %v504, 0.0
  %v521 = vmax.f32 %v505, 0.0
  %v522 = vmax.f32 %v506, 0.0
  %v523 = vmax.f32 %v507, 0.0
  %v524 = vmax.f32 %v508, 0.0
  %v525 = vmax.f32 %v509, 0.0
  %v526 = vmax.f32 %v510, 0.0
  %v527 = vpack.c.bf16 %v512, %v511
  %v528 = vpack.c.bf16 %v514, %v513
  %v529 = vpack.c.bf16 %v516, %v515
  %v530 = vpack.c.bf16 %v518, %v517
  %v531 = vpack.c.bf16 %v520, %v519
  %v532 = vpack.c.bf16 %v522, %v521
  %v533 = vpack.c.bf16 %v524, %v523
  %v534 = vpack.c.bf16 %v526, %v525
  %v535 = vld [vmem:[%s5] sm:$0xf]
  %v536 = vld [vmem:[%s5 + $0x4] sm:$0xf]
  %v537 = vld [vmem:[%s5 + $0x8] sm:$0xf]
  %v538 = vld [vmem:[%s5 + $0xc] sm:$0xf]
  %v539 = vld [vmem:[%s5 + $0x10] sm:$0xf]
  %v540 = vld [vmem:[%s5 + $0x14] sm:$0xf]
  %v541 = vld [vmem:[%s5 + $0x18] sm:$0xf]
  %v542 = vld [vmem:[%s5 + $0x1c] sm:$0xf]
  %v543 = vld [vmem:[%s5 + $0x20] sm:$0xf]
  %v544 = vld [vmem:[%s5 + $0x24] sm:$0xf]
  %v545 = vld [vmem:[%s5 + $0x28] sm:$0xf]
  %v546 = vld [vmem:[%s5 + $0x2c] sm:$0xf]
  %v547 = vld [vmem:[%s5 + $0x30] sm:$0xf]
  %v548 = vld [vmem:[%s5 + $0x34] sm:$0xf]
  %v549 = vld [vmem:[%s5 + $0x38] sm:$0xf]
  %v550 = vld [vmem:[%s5 + $0x3c] sm:$0xf]
  %v551 = vld [vmem:[%s6] sm:$0x1]
  %v553 = vlaneseq
  %v554 = vshrl.u32 %v553, 7
  %v555 = vsub.s32 0, %v554
  %v556 = vrot.slane %v551, %v555
  %v574 = vunpack.c.l.b16 %v535
  %v575 = vunpack.c.l.b16 %v536
  %v576 = vunpack.c.l.b16 %v537
  %v577 = vunpack.c.l.b16 %v538
  %v578 = vunpack.c.l.b16 %v539
  %v579 = vunpack.c.l.b16 %v540
  %v580 = vunpack.c.l.b16 %v541
  %v581 = vunpack.c.l.b16 %v542
  %v582 = vunpack.c.l.b16 %v543
  %v583 = vunpack.c.l.b16 %v544
  %v584 = vunpack.c.l.b16 %v545
  %v585 = vunpack.c.l.b16 %v546
  %v586 = vunpack.c.l.b16 %v547
  %v587 = vunpack.c.l.b16 %v548
  %v588 = vunpack.c.l.b16 %v549
  %v589 = vunpack.c.l.b16 %v550
  %v590 = vpack.c.b16 %v575, %v574
  %v591 = vpack.c.b16 %v577, %v576
  %v592 = vpack.c.b16 %v579, %v578
  %v593 = vpack.c.b16 %v581, %v580
  %v594 = vpack.c.b16 %v583, %v582
  %v595 = vpack.c.b16 %v585, %v584
  %v596 = vpack.c.b16 %v587, %v586
  %v597 = vpack.c.b16 %v589, %v588
  %606 = vmatprep.subr.bf16.mxu0 0
  %607 = vmatpush1.bf16.msra.mxu0 %v590
  %608 = vmatprep.subr.bf16.mxu0 0
  %609 = vmatpush1.bf16.msra.mxu0 %v591
  %610 = vmatprep.subr.bf16.mxu0 0
  %611 = vmatpush1.bf16.msra.mxu0 %v592
  %612 = vmatprep.subr.bf16.mxu0 0
  %613 = vmatpush1.bf16.msra.mxu0 %v593
  %614 = vmatprep.subr.bf16.mxu0 0
  %615 = vmatpush1.bf16.msra.mxu0 %v594
  %616 = vmatprep.subr.bf16.mxu0 0
  %617 = vmatpush1.bf16.msra.mxu0 %v595
  %618 = vmatprep.subr.bf16.mxu0 0
  %619 = vmatpush1.bf16.msra.mxu0 %v596
  %620 = vmatprep.subr.bf16.mxu0 0
  %621 = vmatpush1.bf16.msra.mxu0 %v597
  %622 = vmatprep.subr.bf16.mxu0 0
  %623 = vmatpush1.bf16.msra.mxu0 0
  %624 = vmatprep.subr.bf16.mxu0 0
  %625 = vmatpush1.bf16.msra.mxu0 0
  %626 = vmatprep.subr.bf16.mxu0 0
  %627 = vmatpush1.bf16.msra.mxu0 0
  %628 = vmatprep.subr.bf16.mxu0 0
  %629 = vmatpush1.bf16.msra.mxu0 0
  %630 = vmatprep.subr.bf16.mxu0 0
  %631 = vmatpush1.bf16.msra.mxu0 0
  %632 = vmatprep.subr.bf16.mxu0 0
  %633 = vmatpush1.bf16.msra.mxu0 0
  %634 = vmatprep.subr.bf16.mxu0 0
  %635 = vmatpush1.bf16.msra.mxu0 0
  %636 = vmatprep.subr.bf16.mxu0 0
  %637 = vmatpush1.bf16.msra.mxu0 0
  %638 = vmatprep.mubr.bf16.mxu0 0
  %639 = vmatmul.mubr.bf16.gmra.mrb[0].mxu0 %v527
  %v640 = vpop.f32.mrb[0].mxu0
  %v641 = vadd.f32 %v556, %v640
  %v642 = vpop.f32.mrb[0].mxu0
  %v643 = vpop.f32.mrb[0].mxu0
  %v644 = vadd.f32 %v556, %v643
  %v645 = vpop.f32.mrb[0].mxu0
  %646 = vmatprep.mubr.bf16.mxu0 0
  %647 = vmatmul.mubr.bf16.gmra.mrb[0].mxu0 %v528
  %v648 = vpop.f32.mrb[0].mxu0
  %v649 = vadd.f32 %v556, %v648
  %v650 = vpop.f32.mrb[0].mxu0
  %v651 = vpop.f32.mrb[0].mxu0
  %v652 = vadd.f32 %v556, %v651
  %v653 = vpop.f32.mrb[0].mxu0
  %654 = vmatprep.mubr.bf16.mxu0 0
  %655 = vmatmul.mubr.bf16.gmra.mrb[0].mxu0 %v529
  %v656 = vpop.f32.mrb[0].mxu0
  %v657 = vadd.f32 %v556, %v656
  %v658 = vpop.f32.mrb[0].mxu0
  %v659 = vpop.f32.mrb[0].mxu0
  %v660 = vadd.f32 %v556, %v659
  %v661 = vpop.f32.mrb[0].mxu0
  %662 = vmatprep.mubr.bf16.mxu0 0
  %663 = vmatmul.mubr.bf16.gmra.mrb[0].mxu0 %v530
  %v664 = vpop.f32.mrb[0].mxu0
  %v665 = vadd.f32 %v556, %v664
  %v666 = vpop.f32.mrb[0].mxu0
  %v667 = vpop.f32.mrb[0].mxu0
  %v668 = vadd.f32 %v556, %v667
  %v669 = vpop.f32.mrb[0].mxu0
  %670 = vmatprep.mubr.bf16.mxu0 0
  %671 = vmatmul.mubr.bf16.gmra.mrb[0].mxu0 %v531
  %v672 = vpop.f32.mrb[0].mxu0
  %v673 = vadd.f32 %v556, %v672
  %v674 = vpop.f32.mrb[0].mxu0
  %v675 = vpop.f32.mrb[0].mxu0
  %v676 = vadd.f32 %v556, %v675
  %v677 = vpop.f32.mrb[0].mxu0
  %678 = vmatprep.mubr.bf16.mxu0 0
  %679 = vmatmul.mubr.bf16.gmra.mrb[0].mxu0 %v532
  %v680 = vpop.f32.mrb[0].mxu0
  %v681 = vadd.f32 %v556, %v680
  %v682 = vpop.f32.mrb[0].mxu0
  %v683 = vpop.f32.mrb[0].mxu0
  %v684 = vadd.f32 %v556, %v683
  %v685 = vpop.f32.mrb[0].mxu0
  %686 = vmatprep.mubr.bf16.mxu0 0
  %687 = vmatmul.mubr.bf16.gmra.mrb[0].mxu0 %v533
  %v688 = vpop.f32.mrb[0].mxu0
  %v689 = vadd.f32 %v556, %v688
  %v690 = vpop.f32.mrb[0].mxu0
  %v691 = vpop.f32.mrb[0].mxu0
  %v692 = vadd.f32 %v556, %v691
  %v693 = vpop.f32.mrb[0].mxu0
  %694 = vmatprep.mubr.bf16.mxu0 0
  %695 = vmatmul.mubr.bf16.gmra.mrb[0].mxu0 %v534
  %v696 = vpop.f32.mrb[0].mxu0
  %v697 = vadd.f32 %v556, %v696
  %v698 = vpop.f32.mrb[0].mxu0
  %v699 = vpop.f32.mrb[0].mxu0
  %v700 = vadd.f32 %v556, %v699
  %v701 = vpop.f32.mrb[0].mxu0
  %702 = vdwg.mxu0
  %v703 = vmax.f32 %v641, 0.0
  %v704 = vmax.f32 %v644, 0.0
  %v705 = vmax.f32 %v649, 0.0
  %v706 = vmax.f32 %v652, 0.0
  %v707 = vmax.f32 %v657, 0.0
  %v708 = vmax.f32 %v660, 0.0
  %v709 = vmax.f32 %v665, 0.0
  %v710 = vmax.f32 %v668, 0.0
  %v711 = vmax.f32 %v673, 0.0
  %v712 = vmax.f32 %v676, 0.0
  %v713 = vmax.f32 %v681, 0.0
  %v714 = vmax.f32 %v684, 0.0
  %v715 = vmax.f32 %v689, 0.0
  %v716 = vmax.f32 %v692, 0.0
  %v717 = vmax.f32 %v697, 0.0
  %v718 = vmax.f32 %v700, 0.0
  %v719 = vld [vmem:[%s7] sm:$0xf]
  %v720 = vpack.c.bf16 %v704, %v703
  %v721 = vpack.c.bf16 %v706, %v705
  %v722 = vpack.c.bf16 %v708, %v707
  %v723 = vpack.c.bf16 %v710, %v709
  %v724 = vpack.c.bf16 %v712, %v711
  %v725 = vpack.c.bf16 %v714, %v713
  %v726 = vpack.c.bf16 %v716, %v715
  %v727 = vpack.c.bf16 %v718, %v717
  %728 = vmatprep.subr.bf16.mxu0 0
  %729 = vmatpush1.bf16.xpose.msra.mxu0 %v720
  %730 = vmatprep.subr.bf16.mxu0 0
  %731 = vmatpush1.bf16.xpose.msra.mxu0 %v721
  %732 = vmatprep.subr.bf16.mxu0 0
  %733 = vmatpush1.bf16.xpose.msra.mxu0 %v722
  %734 = vmatprep.subr.bf16.mxu0 0
  %735 = vmatpush1.bf16.xpose.msra.mxu0 %v723
  %736 = vmatprep.subr.bf16.mxu0 0
  %737 = vmatpush1.bf16.xpose.msra.mxu0 %v724
  %738 = vmatprep.subr.bf16.mxu0 0
  %739 = vmatpush1.bf16.xpose.msra.mxu0 %v725
  %740 = vmatprep.subr.bf16.mxu0 0
  %741 = vmatpush1.bf16.xpose.msra.mxu0 %v726
  %742 = vmatprep.subr.bf16.mxu0 0
  %743 = vmatpush1.bf16.xpose.msra.mxu0 %v727
  %744 = vmatprep.subr.bf16.mxu0 0
  %745 = vmatpush1.bf16.xpose.msra.mxu0 0
  %746 = vmatprep.subr.bf16.mxu0 0
  %747 = vmatpush1.bf16.xpose.msra.mxu0 0
  %748 = vmatprep.subr.bf16.mxu0 0
  %749 = vmatpush1.bf16.xpose.msra.mxu0 0
  %750 = vmatprep.subr.bf16.mxu0 0
  %751 = vmatpush1.bf16.xpose.msra.mxu0 0
  %752 = vmatprep.subr.bf16.mxu0 0
  %753 = vmatpush1.bf16.xpose.msra.mxu0 0
  %754 = vmatprep.subr.bf16.mxu0 0
  %755 = vmatpush1.bf16.xpose.msra.mxu0 0
  %756 = vmatprep.subr.bf16.mxu0 0
  %757 = vmatpush1.bf16.xpose.msra.mxu0 0
  %758 = vmatprep.subr.bf16.mxu0 0
  %759 = vmatpush1.bf16.xpose.msra.mxu0 0
  %760 = vmatprep.mubr.bf16.mxu0 0
  %761 = vmatmul.mubr.bf16.gmra.mrb[0].mxu0 %v719
  %v762 = vpop.f32.mrb[0].mxu0
  %v763 = vadd.f32 0.0, %v762
  %v764 = vpop.f32.mrb[0].mxu0
  %v765 = vpop.f32.mrb[0].mxu0
  %v766 = vpop.f32.mrb[0].mxu0
  %767 = vdwg.mxu0
  %s768 = sld [smem:[#allocation2]]
  %v769 = vstv %s768
  %v770 = vadd.f32 %v763, %v769
  %771 = vst [vmem:[%s9] sm:$0x1] %v770
  // Predicated region
  $region38: #{critic_forward.1} parent=0 // pred_check
    _
  $region39: #{critic_forward.1} parent=0 // pred_check_branch
    %773 = sbr.rel (0) target = $region41
  $region40: #{critic_forward.1} parent=0 // pred_region
    _
  $region41: #{critic_forward.1} parent=0 // pred_fallthru
    _
  // Predicated region
  $region42: #{critic_forward.1} parent=0 // pred_check
    _
  $region43: #{critic_forward.1} parent=0 // pred_check_branch
    %775 = sbr.rel (0) target = $region45
  $region44: #{critic_forward.1} parent=0 // pred_region
    _
  $region45: #{critic_forward.1} parent=0 // pred_fallthru
    _

</llo_original>
